<compile_context>
chip_gen: v7x
topology: tpu7x:2x2x1
jax: 0.10.0
libtpu: 0.0.40
codegen_flags: <defaults>
</compile_context>

<pallas_src>
import jax
import jax.numpy as jnp
from jax.experimental import pallas as pl
from jax.experimental.pallas import tpu as pltpu


def _round_up(x, m):
    return ((x + m - 1) // m) * m


def value_net_kernel(x_ref, w1_ref, b1_ref, w2_ref, b2_ref, w3_ref, b3_ref, o_ref):
    """One batch tile of q = fc3(relu(fc2(relu(fc1(x)))))."""
    x = x_ref[...]                              # (TB, S) f32
    TB, S = x.shape

    # ---- fc1 ----
    if S <= 8:
        # Degenerate contraction dim: S broadcast FMAs on the VPU instead of
        # an MXU push/pop round-trip (f32 throughout; cheap on v5e too).
        w1 = w1_ref[...].astype(jnp.float32)    # (S, H)
        acc = x[:, 0:1] * w1[0:1, :] + b1_ref[...]
        for s in range(1, S):
            acc = acc + x[:, s:s + 1] * w1[s:s + 1, :]
        h1 = jnp.maximum(acc, 0.0)
    else:
        h1 = jnp.dot(x.astype(jnp.bfloat16), w1_ref[...].astype(jnp.bfloat16),
                     preferred_element_type=jnp.float32)
        h1 = jnp.maximum(h1 + b1_ref[...], 0.0)

    # ---- fc2 ---- (bf16 MXU inputs, f32 accumulate / bias / relu)
    h2 = jnp.dot(h1.astype(jnp.bfloat16), w2_ref[...],
                 preferred_element_type=jnp.float32)
    h2 = jnp.maximum(h2 + b2_ref[...], 0.0)

    # ---- fc3 ---- (lane-padded output: full unmasked vector stores)
    q = jnp.dot(h2.astype(jnp.bfloat16), w3_ref[...],
                preferred_element_type=jnp.float32)
    o_ref[...] = (q + b3_ref[...]).astype(o_ref.dtype)


def value_network_forward(state, params, *, block_b=256):
    """state: (B, state_dim) f32. Returns (B, action_dim) f32 Q-values."""
    w1, b1 = params["w1"], params["b1"]
    w2, b2 = params["w2"], params["b2"]
    w3p, b3p = params["w3_padded"], params["b3_padded"]
    action_dim = params["action_dim"]

    B, S = state.shape
    Ap = w3p.shape[1]                           # lane-padded out width (x128)

    # Batch tile: multiple of 8 sublanes, capped (weights + two activation
    # slabs stay well under the 32 MiB scoped-VMEM default on all chips).
    TB = min(block_b, _round_up(max(B, 8), 8))
    TB = _round_up(TB, 8)
    Bp = _round_up(B, TB)
    if Bp != B:
        state = jnp.pad(state, ((0, Bp - B), (0, 0)))

    grid = (Bp // TB,)

    # Constant index_map => weights/biases stay VMEM-resident across the grid.
    def resident(a):
        nd = a.ndim
        return pl.BlockSpec(a.shape, lambda i, _nd=nd: (0,) * _nd)

    q_padded = pl.pallas_call(
        value_net_kernel,
        out_shape=jax.ShapeDtypeStruct((Bp, Ap), jnp.float32),
        grid=grid,
        in_specs=[
            pl.BlockSpec((TB, S), lambda i: (i, 0)),     # streaming batch tile
            resident(w1), resident(b1),
            resident(w2), resident(b2),
            resident(w3p), resident(b3p),
        ],
        out_specs=pl.BlockSpec((TB, Ap), lambda i: (i, 0)),
        compiler_params=pltpu.CompilerParams(
            dimension_semantics=("parallel",),           # megacore on v7x
        ),
    )(state, w1, b1, w2, b2, w3p, b3p)

    return q_padded[:B, :action_dim]


def init_value_network_params(key, state_dim, action_dim, hidden_dim=256):
    """nn.Linear-style init (U[-1/sqrt(fan_in), 1/sqrt(fan_in)]).

    fc2/fc3 weights stored bf16 (MXU input dtype); fc1 weight stored f32 when
    state_dim <= 8 (VPU path, avoids an in-kernel upcast); biases f32; last
    layer pre-padded to lane width 128.
    """
    ks = jax.random.split(key, 6)

    def linear(kw, kb, fan_in, fan_out, wdtype):
        bound = 1.0 / jnp.sqrt(jnp.float32(fan_in))
        w = jax.random.uniform(kw, (fan_in, fan_out), jnp.float32, -bound, bound)
        b = jax.random.uniform(kb, (1, fan_out), jnp.float32, -bound, bound)
        return w.astype(wdtype), b

    w1_dtype = jnp.float32 if state_dim <= 8 else jnp.bfloat16
    w1, b1 = linear(ks[0], ks[1], state_dim, hidden_dim, w1_dtype)
    w2, b2 = linear(ks[2], ks[3], hidden_dim, hidden_dim, jnp.bfloat16)
    w3, b3 = linear(ks[4], ks[5], hidden_dim, action_dim, jnp.bfloat16)

    a_pad = _round_up(max(action_dim, 128), 128)
    w3p = jnp.zeros((hidden_dim, a_pad), jnp.bfloat16).at[:, :action_dim].set(w3)
    b3p = jnp.zeros((1, a_pad), jnp.float32).at[:, :action_dim].set(b3)

    return {"w1": w1, "b1": b1, "w2": w2, "b2": b2,
            "w3_padded": w3p, "b3_padded": b3p, "action_dim": action_dim}


def reference_forward(state, p):
    """Pure-JAX reference with the same bf16-weight / bf16-activation-input,
    f32-accumulate quantization as the kernel."""
    w1 = p["w1"].astype(jnp.float32)
    w2 = p["w2"].astype(jnp.float32)
    w3 = p["w3_padded"][:, :p["action_dim"]].astype(jnp.float32)
    b3 = p["b3_padded"][:, :p["action_dim"]]
    h1 = jax.nn.relu(state @ w1 + p["b1"])
    h1 = h1.astype(jnp.bfloat16).astype(jnp.float32)
    h2 = jax.nn.relu(h1 @ w2 + p["b2"])
    h2 = h2.astype(jnp.bfloat16).astype(jnp.float32)
    return h2 @ w3 + b3


if __name__ == "__main__":
    # Env from the script: state_dim = 2 (demand, predicted_power), 2 actions.
    state_dim, action_dim, hidden_dim = 2, 2, 256
    batch = 256          # replay-batch sized call; block_b=128 -> 2 grid steps

    key = jax.random.PRNGKey(0)
    k_params, k_state = jax.random.split(key)
    params = init_value_network_params(k_params, state_dim, action_dim, hidden_dim)
    state = jax.random.uniform(k_state, (batch, state_dim), jnp.float32, 0.0, 100.0)

    q_values = value_network_forward(state, params, block_b=128)
    q_values = jax.block_until_ready(q_values)

    q_ref = reference_forward(state, params)
    assert q_values.shape == (batch, action_dim)
    assert jnp.allclose(q_values, q_ref, atol=1e-1, rtol=2e-2), "mismatch vs JAX reference"

    print("KERNEL_OK")
</pallas_src>

<mosaic_0001>
module attributes {stable_mosaic.version = 11 : i64} {
  func.func @value_net_kernel(%arg0: i32, %arg1: memref<128x2xf32, #tpu.memory_space<vmem>>, %arg2: memref<2x256xf32, #tpu.memory_space<vmem>>, %arg3: memref<1x256xf32, #tpu.memory_space<vmem>>, %arg4: memref<256x256xbf16, #tpu.memory_space<vmem>>, %arg5: memref<1x256xf32, #tpu.memory_space<vmem>>, %arg6: memref<256x128xbf16, #tpu.memory_space<vmem>>, %arg7: memref<1x128xf32, #tpu.memory_space<vmem>>, %arg8: memref<128x128xf32, #tpu.memory_space<vmem>>) attributes {dimension_semantics = [#tpu.dimension_semantics<parallel>], iteration_bounds = array<i64: 2>, scalar_prefetch = 0 : i64, scratch_operands = 0 : i64, tpu.core_type = #tpu.core_type<tc>, window_params = [{transform_indices = @transform_0, window_bounds = array<i64: 128, 2>}, {pipeline_mode = #tpu.pipeline_mode<synchronous>, transform_indices = @transform_1, window_bounds = array<i64: 2, 256>}, {pipeline_mode = #tpu.pipeline_mode<synchronous>, transform_indices = @transform_2, window_bounds = array<i64: 1, 256>}, {pipeline_mode = #tpu.pipeline_mode<synchronous>, transform_indices = @transform_3, window_bounds = array<i64: 256, 256>}, {pipeline_mode = #tpu.pipeline_mode<synchronous>, transform_indices = @transform_4, window_bounds = array<i64: 1, 256>}, {pipeline_mode = #tpu.pipeline_mode<synchronous>, transform_indices = @transform_5, window_bounds = array<i64: 256, 128>}, {pipeline_mode = #tpu.pipeline_mode<synchronous>, transform_indices = @transform_6, window_bounds = array<i64: 1, 128>}, {transform_indices = @transform_7, window_bounds = array<i64: 128, 128>}]} {
    %c0 = arith.constant 0 : index
    %c0_0 = arith.constant 0 : index
    %0 = vector.load %arg1[%c0, %c0_0] : memref<128x2xf32, #tpu.memory_space<vmem>>, vector<128x2xf32>
    %c0_1 = arith.constant 0 : index
    %c0_2 = arith.constant 0 : index
    %1 = vector.load %arg2[%c0_1, %c0_2] : memref<2x256xf32, #tpu.memory_space<vmem>>, vector<2x256xf32>
    %2 = vector.extract_strided_slice %0 {offsets = [0, 0], sizes = [128, 1], strides = [1, 1]} : vector<128x2xf32> to vector<128x1xf32>
    %3 = vector.extract_strided_slice %1 {offsets = [0, 0], sizes = [1, 256], strides = [1, 1]} : vector<2x256xf32> to vector<1x256xf32>
    %4 = vector.broadcast %2 : vector<128x1xf32> to vector<128x256xf32>
    %5 = vector.broadcast %3 : vector<1x256xf32> to vector<128x256xf32>
    %6 = arith.mulf %4, %5 : vector<128x256xf32>
    %c0_3 = arith.constant 0 : index
    %c0_4 = arith.constant 0 : index
    %7 = vector.load %arg3[%c0_3, %c0_4] : memref<1x256xf32, #tpu.memory_space<vmem>>, vector<1x256xf32>
    %8 = vector.broadcast %7 : vector<1x256xf32> to vector<128x256xf32>
    %9 = arith.addf %6, %8 : vector<128x256xf32>
    %10 = vector.extract_strided_slice %0 {offsets = [0, 1], sizes = [128, 1], strides = [1, 1]} : vector<128x2xf32> to vector<128x1xf32>
    %11 = vector.extract_strided_slice %1 {offsets = [1, 0], sizes = [1, 256], strides = [1, 1]} : vector<2x256xf32> to vector<1x256xf32>
    %12 = vector.broadcast %10 : vector<128x1xf32> to vector<128x256xf32>
    %13 = vector.broadcast %11 : vector<1x256xf32> to vector<128x256xf32>
    %14 = arith.mulf %12, %13 : vector<128x256xf32>
    %15 = arith.addf %9, %14 : vector<128x256xf32>
    %cst = arith.constant 0.000000e+00 : f32
    %16 = vector.broadcast %cst : f32 to vector<128x256xf32>
    %17 = arith.maximumf %15, %16 : vector<128x256xf32>
    %18 = arith.truncf %17 : vector<128x256xf32> to vector<128x256xbf16>
    %c0_5 = arith.constant 0 : index
    %c0_6 = arith.constant 0 : index
    %19 = vector.load %arg4[%c0_5, %c0_6] : memref<256x256xbf16, #tpu.memory_space<vmem>>, vector<256x256xbf16>
    %cst_7 = arith.constant dense<0.000000e+00> : vector<128x256xf32>
    %20 = tpu.matmul %18, %19, %cst_7 {dimension_numbers = #tpu.dot_dimension_numbers<[1], [0], [0], [1], [0, 0, 1, 1], [], []>} : vector<128x256xbf16>, vector<256x256xbf16>, vector<128x256xf32> -> vector<128x256xf32>
    %c0_8 = arith.constant 0 : index
    %c0_9 = arith.constant 0 : index
    %21 = vector.load %arg5[%c0_8, %c0_9] : memref<1x256xf32, #tpu.memory_space<vmem>>, vector<1x256xf32>
    %22 = vector.broadcast %21 : vector<1x256xf32> to vector<128x256xf32>
    %23 = arith.addf %20, %22 : vector<128x256xf32>
    %cst_10 = arith.constant 0.000000e+00 : f32
    %24 = vector.broadcast %cst_10 : f32 to vector<128x256xf32>
    %25 = arith.maximumf %23, %24 : vector<128x256xf32>
    %26 = arith.truncf %25 : vector<128x256xf32> to vector<128x256xbf16>
    %c0_11 = arith.constant 0 : index
    %c0_12 = arith.constant 0 : index
    %27 = vector.load %arg6[%c0_11, %c0_12] : memref<256x128xbf16, #tpu.memory_space<vmem>>, vector<256x128xbf16>
    %cst_13 = arith.constant dense<0.000000e+00> : vector<128x128xf32>
    %28 = tpu.matmul %26, %27, %cst_13 {dimension_numbers = #tpu.dot_dimension_numbers<[1], [0], [0], [1], [0, 0, 1, 1], [], []>} : vector<128x256xbf16>, vector<256x128xbf16>, vector<128x128xf32> -> vector<128x128xf32>
    %c0_14 = arith.constant 0 : index
    %c0_15 = arith.constant 0 : index
    %29 = vector.load %arg7[%c0_14, %c0_15] : memref<1x128xf32, #tpu.memory_space<vmem>>, vector<1x128xf32>
    %30 = vector.broadcast %29 : vector<1x128xf32> to vector<128x128xf32>
    %31 = arith.addf %28, %30 : vector<128x128xf32>
    %c0_16 = arith.constant 0 : index
    %c0_17 = arith.constant 0 : index
    %32 = vector.load %arg8[%c0_16, %c0_17] : memref<128x128xf32, #tpu.memory_space<vmem>>, vector<128x128xf32>
    tpu.vector_store %arg8[%c0_16, %c0_17], %31 {strides = array<i32>} : memref<128x128xf32, #tpu.memory_space<vmem>>, vector<128x128xf32>,
    return
  }
  func.func @transform_0(%arg0: i32) -> (i32, i32) {
    %c0_i32 = arith.constant 0 : i32
    %c0_i32_0 = arith.constant 0 : i32
    return %arg0, %c0_i32 : i32, i32
  }
  func.func @transform_1(%arg0: i32) -> (i32, i32) {
    %c0_i32 = arith.constant 0 : i32
    %c0_i32_0 = arith.constant 0 : i32
    %c0_i32_1 = arith.constant 0 : i32
    return %c0_i32, %c0_i32_0 : i32, i32
  }
  func.func @transform_2(%arg0: i32) -> (i32, i32) {
    %c0_i32 = arith.constant 0 : i32
    %c0_i32_0 = arith.constant 0 : i32
    %c0_i32_1 = arith.constant 0 : i32
    return %c0_i32, %c0_i32_0 : i32, i32
  }
  func.func @transform_3(%arg0: i32) -> (i32, i32) {
    %c0_i32 = arith.constant 0 : i32
    %c0_i32_0 = arith.constant 0 : i32
    %c0_i32_1 = arith.constant 0 : i32
    return %c0_i32, %c0_i32_0 : i32, i32
  }
  func.func @transform_4(%arg0: i32) -> (i32, i32) {
    %c0_i32 = arith.constant 0 : i32
    %c0_i32_0 = arith.constant 0 : i32
    %c0_i32_1 = arith.constant 0 : i32
    return %c0_i32, %c0_i32_0 : i32, i32
  }
  func.func @transform_5(%arg0: i32) -> (i32, i32) {
    %c0_i32 = arith.constant 0 : i32
    %c0_i32_0 = arith.constant 0 : i32
    %c0_i32_1 = arith.constant 0 : i32
    return %c0_i32, %c0_i32_0 : i32, i32
  }
  func.func @transform_6(%arg0: i32) -> (i32, i32) {
    %c0_i32 = arith.constant 0 : i32
    %c0_i32_0 = arith.constant 0 : i32
    %c0_i32_1 = arith.constant 0 : i32
    return %c0_i32, %c0_i32_0 : i32, i32
  }
  func.func @transform_7(%arg0: i32) -> (i32, i32) {
    %c0_i32 = arith.constant 0 : i32
    %c0_i32_0 = arith.constant 0 : i32
    return %arg0, %c0_i32 : i32, i32
  }
}

</mosaic_0001>

<llo_original>
// kernel: tpu_custom_call.1
$region0: #{tpu_custom_call.1}
  #allocation0 [shape = 'u32[]', space=smem, size = 0x4, offset = 0x4, fixed_abs, tag = 'smem constant byte address 0x4 - core index']
  #allocation1 [shape = 'u32[144,128]{1,0:T(1,128)}', space=vmem, size = 0x12000, scoped, tag = 'internal scratch']
  %s0 = inlined_call_operand.vmem [shape: f32[256,2], index: 0, kind: input, shape index: {}]
  %s1 = inlined_call_operand.vmem [shape: f32[2,256], index: 1, kind: input, shape index: {}]
  %s2 = inlined_call_operand.vmem [shape: f32[1,256], index: 2, kind: input, shape index: {}]
  %s3 = inlined_call_operand.vmem [shape: bf16[256,256], index: 3, kind: input, shape index: {}]
  %s4 = inlined_call_operand.vmem [shape: f32[1,256], index: 4, kind: input, shape index: {}]
  %s5 = inlined_call_operand.hbm [shape: bf16[256,128], index: 5, kind: input, shape index: {}]
  %s6 = inlined_call_operand.vmem [shape: f32[1,128], index: 6, kind: input, shape index: {}]
  %s7 = inlined_call_operand.hbm [shape: f32[256,128], index: 7, kind: output, shape index: {}]
  %s8 = sld [smem:[#allocation0]]
  $region65: #{tpu_custom_call.1} parent=0
    _
  %s10 = ssub.s32 1, %s8
  %s11 = scalar_select 0, %s10, %s8
  $region1: #{tpu_custom_call.1} parent=0
    #allocation2 [shape = 'u8[65536]{0}', space=vmem, size = 0x10000, scoped, tag = 'input window, operand 5, single buffered']
    #allocation3 [shape = 's32[2]{0}', space=sflag, size = 0x8, scoped, tag = 'scoped memory for tpu_custom_call.1']
    #allocation4 [shape = 's32[2]{0}', space=sflag, size = 0x8, scoped, tag = 'scoped memory for tpu_custom_call.1']
    #allocation5 [shape = 'u8[131072]{0}', space=vmem, size = 0x20000, scoped, tag = 'output window, operand 0']
    %12 = vsyncpa [#allocation3], 0
    %13 = vsyncpa [#allocation4], 0
    %s14 = scalar_lea.sflag [#allocation4], 1
    %15 = vsyncpa %s14, 0
    loop: start=0, step=1, limit=4
    $region2: #{tpu_custom_call.1} parent=1 // loop_pre_header
      _
    $region3: #{tpu_custom_call.1} parent=1 // loop_header
      %s17 = sphi 0, %s21
      %p18 = scmp.ge.s32.totalorder %s17, 4
      %s27 = sphi 0, %s29
      %s30 = sphi 0, %s27
      %s31 = sphi 0, %s30
      %s47 = sphi 0, %s31
      %s51 = sphi 0, %s51
      %s53 = sphi 0, %s51
      %s54 = sphi 0, %s53
      %s68 = sphi 0, %s54
      %s72 = sphi 0, %s72
      %s74 = sphi 0, %s72
      %s75 = sphi 0, %s74
      %s89 = sphi 0, %s75
      %s93 = sphi 0, %s93
      %s95 = sphi 0, %s93
      %s96 = sphi 0, %s95
      %s110 = sphi 0, %s96
      %s114 = sphi 0, %s114
      %s116 = sphi 0, %s114
      %s117 = sphi 0, %s116
      %s131 = sphi 0, %s117
      %s135 = sphi 0, %s135
      %s137 = sphi 0, %s135
      %s138 = sphi 0, %s137
      %s152 = sphi 0, %s138
      %s156 = sphi 0, %s156
      %s158 = sphi 0, %s156
      %s159 = sphi 0, %s158
      %s173 = sphi 0, %s159
      %s179 = sphi 0, %s181
      %s182 = sphi 0, %s179
      %s183 = sphi 0, %s182
      %s199 = sphi 0, %s183
    $region4: #{tpu_custom_call.1} parent=1 // loop_header_branch
      %20 = sbr.rel (%p18) target = $region8
    $region5: #{tpu_custom_call.1} parent=1 // loop_body
      %s22 = ssub.s32 %s17, 1
      %s23 = ssub.s32 %s17, 2
      %s24 = sadd.s32 %s17, 1
      %s25 = ssub.s32 %s17, %s24
      %p26 = scmp.eq.s32.totalorder %s25, 0
      %s28 = sadd.s32 %s27, 1
      %s29 = scalar_select %p26, %s27, %s28
      %p32 = pneg %p26
      %p33 = scmp.eq.s32.totalorder %s17, 1
      %p34 = por %p32, %p33
      %p35 = scmp.ne.s32.totalorder %s27, %s30
      %p36 = scmp.eq.s32.totalorder %s17, 0
      %p37 = por %p35, %p36
      %p38 = scmp.ne.s32.totalorder %s27, %s30
      %p39 = scmp.eq.s32.totalorder %s22, 1
      %p40 = por %p38, %p39
      %p41 = scmp.ne.s32.totalorder %s30, %s31
      %p42 = scmp.eq.s32.totalorder %s22, 0
      %p43 = por %p41, %p42
      %p44 = scmp.ne.s32.totalorder %s30, %s31
      %p45 = scmp.eq.s32.totalorder %s23, 1
      %p46 = por %p44, %p45
      %p48 = scmp.ne.s32.totalorder %s31, %s47
      %p49 = scmp.eq.s32.totalorder %s23, 0
      %p50 = por %p48, %p49
      %s52 = sadd.s32 %s51, 1
      %p55 = scmp.eq.s32.totalorder %s17, 1
      %p56 = scmp.ne.s32.totalorder %s51, %s53
      %p57 = scmp.eq.s32.totalorder %s17, 0
      %p58 = por %p56, %p57
      %p59 = scmp.ne.s32.totalorder %s51, %s53
      %p60 = scmp.eq.s32.totalorder %s22, 1
      %p61 = por %p59, %p60
      %p62 = scmp.ne.s32.totalorder %s53, %s54
      %p63 = scmp.eq.s32.totalorder %s22, 0
      %p64 = por %p62, %p63
      %p65 = scmp.ne.s32.totalorder %s53, %s54
      %p66 = scmp.eq.s32.totalorder %s23, 1
      %p67 = por %p65, %p66
      %p69 = scmp.ne.s32.totalorder %s54, %s68
      %p70 = scmp.eq.s32.totalorder %s23, 0
      %p71 = por %p69, %p70
      %s73 = sadd.s32 %s72, 1
      %p76 = scmp.eq.s32.totalorder %s17, 1
      %p77 = scmp.ne.s32.totalorder %s72, %s74
      %p78 = scmp.eq.s32.totalorder %s17, 0
      %p79 = por %p77, %p78
      %p80 = scmp.ne.s32.totalorder %s72, %s74
      %p81 = scmp.eq.s32.totalorder %s22, 1
      %p82 = por %p80, %p81
      %p83 = scmp.ne.s32.totalorder %s74, %s75
      %p84 = scmp.eq.s32.totalorder %s22, 0
      %p85 = por %p83, %p84
      %p86 = scmp.ne.s32.totalorder %s74, %s75
      %p87 = scmp.eq.s32.totalorder %s23, 1
      %p88 = por %p86, %p87
      %p90 = scmp.ne.s32.totalorder %s75, %s89
      %p91 = scmp.eq.s32.totalorder %s23, 0
      %p92 = por %p90, %p91
      %s94 = sadd.s32 %s93, 1
      %p97 = scmp.eq.s32.totalorder %s17, 1
      %p98 = scmp.ne.s32.totalorder %s93, %s95
      %p99 = scmp.eq.s32.totalorder %s17, 0
      %p100 = por %p98, %p99
      %p101 = scmp.ne.s32.totalorder %s93, %s95
      %p102 = scmp.eq.s32.totalorder %s22, 1
      %p103 = por %p101, %p102
      %p104 = scmp.ne.s32.totalorder %s95, %s96
      %p105 = scmp.eq.s32.totalorder %s22, 0
      %p106 = por %p104, %p105
      %p107 = scmp.ne.s32.totalorder %s95, %s96
      %p108 = scmp.eq.s32.totalorder %s23, 1
      %p109 = por %p107, %p108
      %p111 = scmp.ne.s32.totalorder %s96, %s110
      %p112 = scmp.eq.s32.totalorder %s23, 0
      %p113 = por %p111, %p112
      %s115 = sadd.s32 %s114, 1
      %p118 = scmp.eq.s32.totalorder %s17, 1
      %p119 = scmp.ne.s32.totalorder %s114, %s116
      %p120 = scmp.eq.s32.totalorder %s17, 0
      %p121 = por %p119, %p120
      %p122 = scmp.ne.s32.totalorder %s114, %s116
      %p123 = scmp.eq.s32.totalorder %s22, 1
      %p124 = por %p122, %p123
      %p125 = scmp.ne.s32.totalorder %s116, %s117
      %p126 = scmp.eq.s32.totalorder %s22, 0
      %p127 = por %p125, %p126
      %p128 = scmp.ne.s32.totalorder %s116, %s117
      %p129 = scmp.eq.s32.totalorder %s23, 1
      %p130 = por %p128, %p129
      %p132 = scmp.ne.s32.totalorder %s117, %s131
      %p133 = scmp.eq.s32.totalorder %s23, 0
      %p134 = por %p132, %p133
      %s136 = sadd.s32 %s135, 1
      %p139 = scmp.eq.s32.totalorder %s17, 1
      %p140 = scmp.ne.s32.totalorder %s135, %s137
      %p141 = scmp.eq.s32.totalorder %s17, 0
      %p142 = por %p140, %p141
      %p143 = scmp.ne.s32.totalorder %s135, %s137
      %p144 = scmp.eq.s32.totalorder %s22, 1
      %p145 = por %p143, %p144
      %p146 = scmp.ne.s32.totalorder %s137, %s138
      %p147 = scmp.eq.s32.totalorder %s22, 0
      %p148 = por %p146, %p147
      %p149 = scmp.ne.s32.totalorder %s137, %s138
      %p150 = scmp.eq.s32.totalorder %s23, 1
      %p151 = por %p149, %p150
      %p153 = scmp.ne.s32.totalorder %s138, %s152
      %p154 = scmp.eq.s32.totalorder %s23, 0
      %p155 = por %p153, %p154
      %s157 = sadd.s32 %s156, 1
      %p160 = scmp.eq.s32.totalorder %s17, 1
      %p161 = scmp.ne.s32.totalorder %s156, %s158
      %p162 = scmp.eq.s32.totalorder %s17, 0
      %p163 = por %p161, %p162
      %p164 = scmp.ne.s32.totalorder %s156, %s158
      %p165 = scmp.eq.s32.totalorder %s22, 1
      %p166 = por %p164, %p165
      %p167 = scmp.ne.s32.totalorder %s158, %s159
      %p168 = scmp.eq.s32.totalorder %s22, 0
      %p169 = por %p167, %p168
      %p170 = scmp.ne.s32.totalorder %s158, %s159
      %p171 = scmp.eq.s32.totalorder %s23, 1
      %p172 = por %p170, %p171
      %p174 = scmp.ne.s32.totalorder %s159, %s173
      %p175 = scmp.eq.s32.totalorder %s23, 0
      %p176 = por %p174, %p175
      %s177 = ssub.s32 %s17, %s24
      %p178 = scmp.eq.s32.totalorder %s177, 0
      %s180 = sadd.s32 %s179, 1
      %s181 = scalar_select %p178, %s179, %s180
      %p184 = pneg %p178
      %p185 = scmp.eq.s32.totalorder %s17, 1
      %p186 = por %p184, %p185
      %p187 = scmp.ne.s32.totalorder %s179, %s182
      %p188 = scmp.eq.s32.totalorder %s17, 0
      %p189 = por %p187, %p188
      %p190 = scmp.ne.s32.totalorder %s179, %s182
      %p191 = scmp.eq.s32.totalorder %s22, 1
      %p192 = por %p190, %p191
      %p193 = scmp.ne.s32.totalorder %s182, %s183
      %p194 = scmp.eq.s32.totalorder %s22, 0
      %p195 = por %p193, %p194
      %p196 = scmp.ne.s32.totalorder %s182, %s183
      %p197 = scmp.eq.s32.totalorder %s23, 1
      %p198 = por %p196, %p197
      %p200 = scmp.ne.s32.totalorder %s183, %s199
      %p201 = scmp.eq.s32.totalorder %s23, 0
      %p202 = por %p200, %p201
      %p203 = scmp.le.s32.totalorder 1, %s17
      %p204 = scmp.lt.s32.totalorder %s17, 3
      %p205 = pnand %p203, %p204
      %p206 = pneg %p205
      // Predicated region
      $region9: #{tpu_custom_call.1} parent=5 // pred_check
        _
      $region10: #{tpu_custom_call.1} parent=5 // pred_check_branch
        %208 = sbr.rel (%p205) target = $region12
      $region11: #{tpu_custom_call.1} parent=5 // pred_region
        %s209 = ssub.s32 %s17, 1
        // Predicated region
        $region13: #{tpu_custom_call.1} parent=11 // pred_check
          %p210 = pneg %p64
        $region14: #{tpu_custom_call.1} parent=11 // pred_check_branch
          %212 = sbr.rel (%p210) target = $region16
        $region15: #{tpu_custom_call.1} parent=11 // pred_region
          _
        $region16: #{tpu_custom_call.1} parent=11 // pred_fallthru
          _
        // Predicated region
        $region17: #{tpu_custom_call.1} parent=11 // pred_check
          %p213 = pneg %p85
        $region18: #{tpu_custom_call.1} parent=11 // pred_check_branch
          %215 = sbr.rel (%p213) target = $region20
        $region19: #{tpu_custom_call.1} parent=11 // pred_region
          _
        $region20: #{tpu_custom_call.1} parent=11 // pred_fallthru
          _
        // Predicated region
        $region21: #{tpu_custom_call.1} parent=11 // pred_check
          %p216 = pneg %p106
        $region22: #{tpu_custom_call.1} parent=11 // pred_check_branch
          %218 = sbr.rel (%p216) target = $region24
        $region23: #{tpu_custom_call.1} parent=11 // pred_region
          _
        $region24: #{tpu_custom_call.1} parent=11 // pred_fallthru
          _
        // Predicated region
        $region25: #{tpu_custom_call.1} parent=11 // pred_check
          %p219 = pneg %p127
        $region26: #{tpu_custom_call.1} parent=11 // pred_check_branch
          %221 = sbr.rel (%p219) target = $region28
        $region27: #{tpu_custom_call.1} parent=11 // pred_region
          _
        $region28: #{tpu_custom_call.1} parent=11 // pred_fallthru
          _
        // Predicated region
        $region29: #{tpu_custom_call.1} parent=11 // pred_check
          %p222 = pneg %p148
        $region30: #{tpu_custom_call.1} parent=11 // pred_check_branch
          %224 = sbr.rel (%p222) target = $region32
        $region31: #{tpu_custom_call.1} parent=11 // pred_region
          %s226 = ssub.s32 2048, 2048
          %227 = vsyncadd [#allocation3], %s226
          %s228 = sshll.u32 [#allocation2], 4
          %s229 = int_to_ptr.vmem [resolvable:$true] %s228
          %234 = dma.hbm_to_vmem [thread:$0]  %s5, 2048, %s229, [#allocation3], 64, 64, 4
        $region32: #{tpu_custom_call.1} parent=11 // pred_fallthru
          _
        // Predicated region
        $region33: #{tpu_custom_call.1} parent=11 // pred_check
          %p235 = pneg %p169
        $region34: #{tpu_custom_call.1} parent=11 // pred_check_branch
          %237 = sbr.rel (%p235) target = $region36
        $region35: #{tpu_custom_call.1} parent=11 // pred_region
          _
        $region36: #{tpu_custom_call.1} parent=11 // pred_fallthru
          _
      $region12: #{tpu_custom_call.1} parent=5 // pred_fallthru
        _
      %p238 = scmp.lt.s32.totalorder %s17, 2
      // Predicated region
      $region37: #{tpu_custom_call.1} parent=5 // pred_check
        %p239 = pneg %p238
      $region38: #{tpu_custom_call.1} parent=5 // pred_check_branch
        %241 = sbr.rel (%p239) target = $region40
      $region39: #{tpu_custom_call.1} parent=5 // pred_region
        // Predicated region
        $region41: #{tpu_custom_call.1} parent=39 // pred_check
          %p242 = pneg %p37
        $region42: #{tpu_custom_call.1} parent=39 // pred_check_branch
          %244 = sbr.rel (%p242) target = $region44
        $region43: #{tpu_custom_call.1} parent=39 // pred_region
          %s245 = smul.u32 16, %s17
          %p246 = scmp.lt.s32.totalorder %s245, 31
          %s247 = scalar_select %p246, %s245, 31
          %s248 = smul.addr %s247, 8
          %s249 = scalar_lea.vmem %s0, %s248
          %s250 = smul.u32 16, %s17
        $region44: #{tpu_custom_call.1} parent=39 // pred_fallthru
          _
      $region40: #{tpu_custom_call.1} parent=5 // pred_fallthru
        _
      %p251 = scmp.le.s32.totalorder 1, %s17
      %p252 = scmp.lt.s32.totalorder %s17, 3
      %p253 = pnand %p251, %p252
      %p254 = pneg %p253
      // Predicated region
      $region45: #{tpu_custom_call.1} parent=5 // pred_check
        _
      $region46: #{tpu_custom_call.1} parent=5 // pred_check_branch
        %256 = sbr.rel (%p253) target = $region48
      $region47: #{tpu_custom_call.1} parent=5 // pred_region
        %s257 = ssub.s32 %s17, 1
        // Predicated region
        $region49: #{tpu_custom_call.1} parent=47 // pred_check
          %p258 = pneg %p148
        $region50: #{tpu_custom_call.1} parent=47 // pred_check_branch
          %260 = sbr.rel (%p258) target = $region52
        $region51: #{tpu_custom_call.1} parent=47 // pred_region
          %261 = dma.done [#allocation3], 2048
        $region52: #{tpu_custom_call.1} parent=47 // pred_fallthru
          _
        %s262 = smul.u32 16, %s22
        %p263 = scmp.lt.s32.totalorder %s262, 31
        %s264 = scalar_select %p263, %s262, 31
        %s265 = smul.addr %s264, 8
        %s266 = scalar_lea.vmem %s0, %s265
        %p267 = pneg %p43
        %p268 = pneg %p40
        %p269 = pneg %p64
        %p270 = pneg %p61
        %p271 = pneg %p85
        %p272 = pneg %p82
        %p273 = pneg %p106
        %p274 = pneg %p103
        %p275 = pneg %p127
        %p276 = pneg %p124
        %p277 = pneg %p148
        %p278 = pneg %p145
        %p279 = pneg %p169
        %p280 = pneg %p166
        %p281 = pneg %p195
        %p282 = pneg %p192
        %s283 = sand.u32 %s182, 1
        %s284 = scalar_lea.sflag [#allocation4], %s283
        %s285 = sand.u32 %s182, 1
        %s286 = smul.addr %s285, 128
        %s287 = scalar_lea.vmem [#allocation5], %s286
        %s288 = smul.u32 16, %s22
        %p289 = scmp.lt.s32.totalorder %s288, 31
        %s290 = scalar_select %p289, %s288, 31
        %s291 = smul.addr %s290, 8
        %s292 = scalar_lea.vmem %s0, %s291
        %s293 = smul.u32 16, %s22
        %s294 = smul.u32 16, %s22
        %v296 = vld [vmem:[%s292] sm:$0xff]
        %v297 = vld [vmem:[%s292 + $0x8] sm:$0xff]
        %v298 = vld [vmem:[%s292 + $0x10] sm:$0xff]
        %v299 = vld [vmem:[%s292 + $0x18] sm:$0xff]
        %v300 = vld [vmem:[%s292 + $0x20] sm:$0xff]
        %v301 = vld [vmem:[%s292 + $0x28] sm:$0xff]
        %v302 = vld [vmem:[%s292 + $0x30] sm:$0xff]
        %v303 = vld [vmem:[%s292 + $0x38] sm:$0xff]
        %v304 = vld [vmem:[%s292 + $0x40] sm:$0xff]
        %v305 = vld [vmem:[%s292 + $0x48] sm:$0xff]
        %v306 = vld [vmem:[%s292 + $0x50] sm:$0xff]
        %v307 = vld [vmem:[%s292 + $0x58] sm:$0xff]
        %v308 = vld [vmem:[%s292 + $0x60] sm:$0xff]
        %v309 = vld [vmem:[%s292 + $0x68] sm:$0xff]
        %v310 = vld [vmem:[%s292 + $0x70] sm:$0xff]
        %v311 = vld [vmem:[%s292 + $0x78] sm:$0xff]
        %v312 = vld [vmem:[%s1] sm:$0xf]
        %314 = vset.pattern.permute.xlu0 0
        %315 = vperm.xlu0 %314, %v296
        %v316 = vpop.permute.xlu0 %315
        %319 = vset.pattern.permute.xlu0 0
        %320 = vperm.xlu0 %319, %v297
        %v321 = vpop.permute.xlu0 %320
        %324 = vset.pattern.permute.xlu0 0
        %325 = vperm.xlu0 %324, %v298
        %v326 = vpop.permute.xlu0 %325
        %329 = vset.pattern.permute.xlu0 0
        %330 = vperm.xlu0 %329, %v299
        %v331 = vpop.permute.xlu0 %330
        %334 = vset.pattern.permute.xlu0 0
        %335 = vperm.xlu0 %334, %v300
        %v336 = vpop.permute.xlu0 %335
        %339 = vset.pattern.permute.xlu0 0
        %340 = vperm.xlu0 %339, %v301
        %v341 = vpop.permute.xlu0 %340
        %344 = vset.pattern.permute.xlu0 0
        %345 = vperm.xlu0 %344, %v302
        %v346 = vpop.permute.xlu0 %345
        %349 = vset.pattern.permute.xlu0 0
        %350 = vperm.xlu0 %349, %v303
        %v351 = vpop.permute.xlu0 %350
        %354 = vset.pattern.permute.xlu0 0
        %355 = vperm.xlu0 %354, %v304
        %v356 = vpop.permute.xlu0 %355
        %359 = vset.pattern.permute.xlu0 0
        %360 = vperm.xlu0 %359, %v305
        %v361 = vpop.permute.xlu0 %360
        %364 = vset.pattern.permute.xlu0 0
        %365 = vperm.xlu0 %364, %v306
        %v366 = vpop.permute.xlu0 %365
        %369 = vset.pattern.permute.xlu0 0
        %370 = vperm.xlu0 %369, %v307
        %v371 = vpop.permute.xlu0 %370
        %374 = vset.pattern.permute.xlu0 0
        %375 = vperm.xlu0 %374, %v308
        %v376 = vpop.permute.xlu0 %375
        %379 = vset.pattern.permute.xlu0 0
        %380 = vperm.xlu0 %379, %v309
        %v381 = vpop.permute.xlu0 %380
        %384 = vset.pattern.permute.xlu0 0
        %385 = vperm.xlu0 %384, %v310
        %v386 = vpop.permute.xlu0 %385
        %389 = vset.pattern.permute.xlu0 0
        %390 = vperm.xlu0 %389, %v311
        %v391 = vpop.permute.xlu0 %390
        %v394 = vlaneseq
        %v395 = vshrl.u32 %v394, 7
        %v396 = vsub.s32 0, %v395
        %v397 = vrot.slane %v312, %v396
        %v398 = vlaneseq
        %v399 = vshrl.u32 %v398, 7
        %v400 = vsub.s32 2, %v399
        %v401 = vrot.slane %v312, %v400
        %v404 = vlaneseq
        %v405 = vshrl.u32 %v404, 7
        %v406 = vsub.s32 0, %v405
        %v407 = vrot.slane %v397, %v406
        %v408 = vlaneseq
        %v409 = vshrl.u32 %v408, 7
        %v410 = vsub.s32 0, %v409
        %v411 = vrot.slane %v401, %v410
        %v412 = vmul.f32 %v316, %v407
        %v413 = vmul.f32 %v316, %v411
        %v414 = vmul.f32 %v321, %v407
        %v415 = vmul.f32 %v321, %v411
        %v416 = vmul.f32 %v326, %v407
        %v417 = vmul.f32 %v326, %v411
        %v418 = vmul.f32 %v331, %v407
        %v419 = vmul.f32 %v331, %v411
        %v420 = vmul.f32 %v336, %v407
        %v421 = vmul.f32 %v336, %v411
        %v422 = vmul.f32 %v341, %v407
        %v423 = vmul.f32 %v341, %v411
        %v424 = vmul.f32 %v346, %v407
        %v425 = vmul.f32 %v346, %v411
        %v426 = vmul.f32 %v351, %v407
        %v427 = vmul.f32 %v351, %v411
        %v428 = vmul.f32 %v356, %v407
        %v429 = vmul.f32 %v356, %v411
        %v430 = vmul.f32 %v361, %v407
        %v431 = vmul.f32 %v361, %v411
        %v432 = vmul.f32 %v366, %v407
        %v433 = vmul.f32 %v366, %v411
        %v434 = vmul.f32 %v371, %v407
        %v435 = vmul.f32 %v371, %v411
        %v436 = vmul.f32 %v376, %v407
        %v437 = vmul.f32 %v376, %v411
        %v438 = vmul.f32 %v381, %v407
        %v439 = vmul.f32 %v381, %v411
        %v440 = vmul.f32 %v386, %v407
        %v441 = vmul.f32 %v386, %v411
        %v442 = vmul.f32 %v391, %v407
        %v443 = vmul.f32 %v391, %v411
        %v444 = vld [vmem:[%s2] sm:$0x3]
        %v446 = vlaneseq
        %v447 = vshrl.u32 %v446, 7
        %v448 = vsub.s32 0, %v447
        %v449 = vrot.slane %v444, %v448
        %v450 = vlaneseq
        %v451 = vshrl.u32 %v450, 7
        %v452 = vsub.s32 1, %v451
        %v453 = vrot.slane %v444, %v452
        %v456 = vadd.f32 %v412, %v449
        %v457 = vadd.f32 %v413, %v453
        %v458 = vadd.f32 %v414, %v449
        %v459 = vadd.f32 %v415, %v453
        %v460 = vadd.f32 %v416, %v449
        %v461 = vadd.f32 %v417, %v453
        %v462 = vadd.f32 %v418, %v449
        %v463 = vadd.f32 %v419, %v453
        %v464 = vadd.f32 %v420, %v449
        %v465 = vadd.f32 %v421, %v453
        %v466 = vadd.f32 %v422, %v449
        %v467 = vadd.f32 %v423, %v453
        %v468 = vadd.f32 %v424, %v449
        %v469 = vadd.f32 %v425, %v453
        %v470 = vadd.f32 %v426, %v449
        %v471 = vadd.f32 %v427, %v453
        %v472 = vadd.f32 %v428, %v449
        %v473 = vadd.f32 %v429, %v453
        %v474 = vadd.f32 %v430, %v449
        %v475 = vadd.f32 %v431, %v453
        %v476 = vadd.f32 %v432, %v449
        %v477 = vadd.f32 %v433, %v453
        %v478 = vadd.f32 %v434, %v449
        %v479 = vadd.f32 %v435, %v453
        %v480 = vadd.f32 %v436, %v449
        %v481 = vadd.f32 %v437, %v453
        %v482 = vadd.f32 %v438, %v449
        %v483 = vadd.f32 %v439, %v453
        %v484 = vadd.f32 %v440, %v449
        %v485 = vadd.f32 %v441, %v453
        %v486 = vadd.f32 %v442, %v449
        %v487 = vadd.f32 %v443, %v453
        %488 = vset.pattern.permute.xlu0 1
        %489 = vperm.xlu0 %488, %v296
        %v490 = vpop.permute.xlu0 %489
        %492 = vset.pattern.permute.xlu0 1
        %493 = vperm.xlu0 %492, %v297
        %v494 = vpop.permute.xlu0 %493
        %496 = vset.pattern.permute.xlu0 1
        %497 = vperm.xlu0 %496, %v298
        %v498 = vpop.permute.xlu0 %497
        %500 = vset.pattern.permute.xlu0 1
        %501 = vperm.xlu0 %500, %v299
        %v502 = vpop.permute.xlu0 %501
        %504 = vset.pattern.permute.xlu0 1
        %505 = vperm.xlu0 %504, %v300
        %v506 = vpop.permute.xlu0 %505
        %508 = vset.pattern.permute.xlu0 1
        %509 = vperm.xlu0 %508, %v301
        %v510 = vpop.permute.xlu0 %509
        %512 = vset.pattern.permute.xlu0 1
        %513 = vperm.xlu0 %512, %v302
        %v514 = vpop.permute.xlu0 %513
        %516 = vset.pattern.permute.xlu0 1
        %517 = vperm.xlu0 %516, %v303
        %v518 = vpop.permute.xlu0 %517
        %520 = vset.pattern.permute.xlu0 1
        %521 = vperm.xlu0 %520, %v304
        %v522 = vpop.permute.xlu0 %521
        %524 = vset.pattern.permute.xlu0 1
        %525 = vperm.xlu0 %524, %v305
        %v526 = vpop.permute.xlu0 %525
        %528 = vset.pattern.permute.xlu0 1
        %529 = vperm.xlu0 %528, %v306
        %v530 = vpop.permute.xlu0 %529
        %532 = vset.pattern.permute.xlu0 1
        %533 = vperm.xlu0 %532, %v307
        %v534 = vpop.permute.xlu0 %533
        %536 = vset.pattern.permute.xlu0 1
        %537 = vperm.xlu0 %536, %v308
        %v538 = vpop.permute.xlu0 %537
        %540 = vset.pattern.permute.xlu0 1
        %541 = vperm.xlu0 %540, %v309
        %v542 = vpop.permute.xlu0 %541
        %544 = vset.pattern.permute.xlu0 1
        %545 = vperm.xlu0 %544, %v310
        %v546 = vpop.permute.xlu0 %545
        %548 = vset.pattern.permute.xlu0 1
        %549 = vperm.xlu0 %548, %v311
        %v550 = vpop.permute.xlu0 %549
        %v552 = vlaneseq
        %v553 = vshrl.u32 %v552, 7
        %v554 = vsub.s32 1, %v553
        %v555 = vrot.slane %v312, %v554
        %v556 = vlaneseq
        %v557 = vshrl.u32 %v556, 7
        %v558 = vsub.s32 3, %v557
        %v559 = vrot.slane %v312, %v558
        %v562 = vlaneseq
        %v563 = vshrl.u32 %v562, 7
        %v564 = vsub.s32 1, %v563
        %v565 = vrot.slane %v555, %v564
        %v566 = vlaneseq
        %v567 = vshrl.u32 %v566, 7
        %v568 = vsub.s32 1, %v567
        %v569 = vrot.slane %v559, %v568
        %v570 = vmul.f32 %v490, %v565
        %v571 = vmul.f32 %v490, %v569
        %v572 = vmul.f32 %v494, %v565
        %v573 = vmul.f32 %v494, %v569
        %v574 = vmul.f32 %v498, %v565
        %v575 = vmul.f32 %v498, %v569
        %v576 = vmul.f32 %v502, %v565
        %v577 = vmul.f32 %v502, %v569
        %v578 = vmul.f32 %v506, %v565
        %v579 = vmul.f32 %v506, %v569
        %v580 = vmul.f32 %v510, %v565
        %v581 = vmul.f32 %v510, %v569
        %v582 = vmul.f32 %v514, %v565
        %v583 = vmul.f32 %v514, %v569
        %v584 = vmul.f32 %v518, %v565
        %v585 = vmul.f32 %v518, %v569
        %v586 = vmul.f32 %v522, %v565
        %v587 = vmul.f32 %v522, %v569
        %v588 = vmul.f32 %v526, %v565
        %v589 = vmul.f32 %v526, %v569
        %v590 = vmul.f32 %v530, %v565
        %v591 = vmul.f32 %v530, %v569
        %v592 = vmul.f32 %v534, %v565
        %v593 = vmul.f32 %v534, %v569
        %v594 = vmul.f32 %v538, %v565
        %v595 = vmul.f32 %v538, %v569
        %v596 = vmul.f32 %v542, %v565
        %v597 = vmul.f32 %v542, %v569
        %v598 = vmul.f32 %v546, %v565
        %v599 = vmul.f32 %v546, %v569
        %v600 = vmul.f32 %v550, %v565
        %v601 = vmul.f32 %v550, %v569
        %v602 = vadd.f32 %v456, %v570
        %v603 = vadd.f32 %v457, %v571
        %v604 = vadd.f32 %v458, %v572
        %v605 = vadd.f32 %v459, %v573
        %v606 = vadd.f32 %v460, %v574
        %v607 = vadd.f32 %v461, %v575
        %v608 = vadd.f32 %v462, %v576
        %v609 = vadd.f32 %v463, %v577
        %v610 = vadd.f32 %v464, %v578
        %v611 = vadd.f32 %v465, %v579
        %v612 = vadd.f32 %v466, %v580
        %v613 = vadd.f32 %v467, %v581
        %v614 = vadd.f32 %v468, %v582
        %v615 = vadd.f32 %v469, %v583
        %v616 = vadd.f32 %v470, %v584
        %v617 = vadd.f32 %v471, %v585
        %v618 = vadd.f32 %v472, %v586
        %v619 = vadd.f32 %v473, %v587
        %v620 = vadd.f32 %v474, %v588
        %v621 = vadd.f32 %v475, %v589
        %v622 = vadd.f32 %v476, %v590
        %v623 = vadd.f32 %v477, %v591
        %v624 = vadd.f32 %v478, %v592
        %v625 = vadd.f32 %v479, %v593
        %v626 = vadd.f32 %v480, %v594
        %v627 = vadd.f32 %v481, %v595
        %v628 = vadd.f32 %v482, %v596
        %v629 = vadd.f32 %v483, %v597
        %v630 = vadd.f32 %v484, %v598
        %v631 = vadd.f32 %v485, %v599
        %v632 = vadd.f32 %v486, %v600
        %v633 = vadd.f32 %v487, %v601
        %v634 = vmax.f32 %v602, 0.0
        %v635 = vmax.f32 %v603, 0.0
        %v636 = vmax.f32 %v604, 0.0
        %v637 = vmax.f32 %v605, 0.0
        %v638 = vmax.f32 %v606, 0.0
        %v639 = vmax.f32 %v607, 0.0
        %v640 = vmax.f32 %v608, 0.0
        %v641 = vmax.f32 %v609, 0.0
        %v642 = vmax.f32 %v610, 0.0
        %v643 = vmax.f32 %v611, 0.0
        %v644 = vmax.f32 %v612, 0.0
        %v645 = vmax.f32 %v613, 0.0
        %v646 = vmax.f32 %v614, 0.0
        %v647 = vmax.f32 %v615, 0.0
        %v648 = vmax.f32 %v616, 0.0
        %v649 = vmax.f32 %v617, 0.0
        %v650 = vmax.f32 %v618, 0.0
        %v651 = vmax.f32 %v619, 0.0
        %v652 = vmax.f32 %v620, 0.0
        %v653 = vmax.f32 %v621, 0.0
        %v654 = vmax.f32 %v622, 0.0
        %v655 = vmax.f32 %v623, 0.0
        %v656 = vmax.f32 %v624, 0.0
        %v657 = vmax.f32 %v625, 0.0
        %v658 = vmax.f32 %v626, 0.0
        %v659 = vmax.f32 %v627, 0.0
        %v660 = vmax.f32 %v628, 0.0
        %v661 = vmax.f32 %v629, 0.0
        %v662 = vmax.f32 %v630, 0.0
        %v663 = vmax.f32 %v631, 0.0
        %v664 = vmax.f32 %v632, 0.0
        %v665 = vmax.f32 %v633, 0.0
        %v666 = vpack.c.bf16 %v636, %v634
        %v667 = vpack.c.bf16 %v637, %v635
        %v668 = vpack.c.bf16 %v640, %v638
        %v669 = vpack.c.bf16 %v641, %v639
        %v670 = vpack.c.bf16 %v644, %v642
        %v671 = vpack.c.bf16 %v645, %v643
        %v672 = vpack.c.bf16 %v648, %v646
        %v673 = vpack.c.bf16 %v649, %v647
        %v674 = vpack.c.bf16 %v652, %v650
        %v675 = vpack.c.bf16 %v653, %v651
        %v676 = vpack.c.bf16 %v656, %v654
        %v677 = vpack.c.bf16 %v657, %v655
        %v678 = vpack.c.bf16 %v660, %v658
        %v679 = vpack.c.bf16 %v661, %v659
        %v680 = vpack.c.bf16 %v664, %v662
        %v681 = vpack.c.bf16 %v665, %v663
        %v682 = vld [vmem:[%s3] sm:$0xff]
        %v683 = vld [vmem:[%s3 + $0x8] sm:$0xff]
        %v684 = vld [vmem:[%s3 + $0x10] sm:$0xff]
        %v685 = vld [vmem:[%s3 + $0x18] sm:$0xff]
        %v686 = vld [vmem:[%s3 + $0x20] sm:$0xff]
        %v687 = vld [vmem:[%s3 + $0x28] sm:$0xff]
        %v688 = vld [vmem:[%s3 + $0x30] sm:$0xff]
        %v689 = vld [vmem:[%s3 + $0x38] sm:$0xff]
        %v690 = vld [vmem:[%s3 + $0x40] sm:$0xff]
        %v691 = vld [vmem:[%s3 + $0x48] sm:$0xff]
        %v692 = vld [vmem:[%s3 + $0x50] sm:$0xff]
        %v693 = vld [vmem:[%s3 + $0x58] sm:$0xff]
        %v694 = vld [vmem:[%s3 + $0x60] sm:$0xff]
        %v695 = vld [vmem:[%s3 + $0x68] sm:$0xff]
        %v696 = vld [vmem:[%s3 + $0x70] sm:$0xff]
        %v697 = vld [vmem:[%s3 + $0x78] sm:$0xff]
        %v698 = vld [vmem:[%s3 + $0x80] sm:$0xff]
        %v699 = vld [vmem:[%s3 + $0x88] sm:$0xff]
        %v700 = vld [vmem:[%s3 + $0x90] sm:$0xff]
        %v701 = vld [vmem:[%s3 + $0x98] sm:$0xff]
        %v702 = vld [vmem:[%s3 + $0xa0] sm:$0xff]
        %v703 = vld [vmem:[%s3 + $0xa8] sm:$0xff]
        %v704 = vld [vmem:[%s3 + $0xb0] sm:$0xff]
        %v705 = vld [vmem:[%s3 + $0xb8] sm:$0xff]
        %v706 = vld [vmem:[%s3 + $0xc0] sm:$0xff]
        %v707 = vld [vmem:[%s3 + $0xc8] sm:$0xff]
        %v708 = vld [vmem:[%s3 + $0xd0] sm:$0xff]
        %v709 = vld [vmem:[%s3 + $0xd8] sm:$0xff]
        %v710 = vld [vmem:[%s3 + $0xe0] sm:$0xff]
        %v711 = vld [vmem:[%s3 + $0xe8] sm:$0xff]
        %v712 = vld [vmem:[%s3 + $0xf0] sm:$0xff]
        %v713 = vld [vmem:[%s3 + $0xf8] sm:$0xff]
        %v714 = vld [vmem:[%s4] sm:$0x3]
        %v716 = vlaneseq
        %v717 = vshrl.u32 %v716, 7
        %v718 = vsub.s32 0, %v717
        %v719 = vrot.slane %v714, %v718
        %v720 = vlaneseq
        %v721 = vshrl.u32 %v720, 7
        %v722 = vsub.s32 1, %v721
        %v723 = vrot.slane %v714, %v722
        %v758 = vunpack.c.l.b16 %v682
        %v759 = vunpack.c.h.b16 %v682
        %v760 = vunpack.c.l.b16 %v683
        %v761 = vunpack.c.h.b16 %v683
        %v762 = vunpack.c.l.b16 %v684
        %v763 = vunpack.c.h.b16 %v684
        %v764 = vunpack.c.l.b16 %v685
        %v765 = vunpack.c.h.b16 %v685
        %v766 = vunpack.c.l.b16 %v686
        %v767 = vunpack.c.h.b16 %v686
        %v768 = vunpack.c.l.b16 %v687
        %v769 = vunpack.c.h.b16 %v687
        %v770 = vunpack.c.l.b16 %v688
        %v771 = vunpack.c.h.b16 %v688
        %v772 = vunpack.c.l.b16 %v689
        %v773 = vunpack.c.h.b16 %v689
        %v774 = vunpack.c.l.b16 %v690
        %v775 = vunpack.c.h.b16 %v690
        %v776 = vunpack.c.l.b16 %v691
        %v777 = vunpack.c.h.b16 %v691
        %v778 = vunpack.c.l.b16 %v692
        %v779 = vunpack.c.h.b16 %v692
        %v780 = vunpack.c.l.b16 %v693
        %v781 = vunpack.c.h.b16 %v693
        %v782 = vunpack.c.l.b16 %v694
        %v783 = vunpack.c.h.b16 %v694
        %v784 = vunpack.c.l.b16 %v695
        %v785 = vunpack.c.h.b16 %v695
        %v786 = vunpack.c.l.b16 %v696
        %v787 = vunpack.c.h.b16 %v696
        %v788 = vunpack.c.l.b16 %v697
        %v789 = vunpack.c.h.b16 %v697
        %v790 = vunpack.c.l.b16 %v698
        %v791 = vunpack.c.h.b16 %v698
        %v792 = vunpack.c.l.b16 %v699
        %v793 = vunpack.c.h.b16 %v699
        %v794 = vunpack.c.l.b16 %v700
        %v795 = vunpack.c.h.b16 %v700
        %v796 = vunpack.c.l.b16 %v701
        %v797 = vunpack.c.h.b16 %v701
        %v798 = vunpack.c.l.b16 %v702
        %v799 = vunpack.c.h.b16 %v702
        %v800 = vunpack.c.l.b16 %v703
        %v801 = vunpack.c.h.b16 %v703
        %v802 = vunpack.c.l.b16 %v704
        %v803 = vunpack.c.h.b16 %v704
        %v804 = vunpack.c.l.b16 %v705
        %v805 = vunpack.c.h.b16 %v705
        %v806 = vunpack.c.l.b16 %v706
        %v807 = vunpack.c.h.b16 %v706
        %v808 = vunpack.c.l.b16 %v707
        %v809 = vunpack.c.h.b16 %v707
        %v810 = vunpack.c.l.b16 %v708
        %v811 = vunpack.c.h.b16 %v708
        %v812 = vunpack.c.l.b16 %v709
        %v813 = vunpack.c.h.b16 %v709
        %v814 = vunpack.c.l.b16 %v710
        %v815 = vunpack.c.h.b16 %v710
        %v816 = vunpack.c.l.b16 %v711
        %v817 = vunpack.c.h.b16 %v711
        %v818 = vunpack.c.l.b16 %v712
        %v819 = vunpack.c.h.b16 %v712
        %v820 = vunpack.c.l.b16 %v713
        %v821 = vunpack.c.h.b16 %v713
        %v822 = vpack.c.b16 %v760, %v758
        %v823 = vpack.c.b16 %v761, %v759
        %v824 = vpack.c.b16 %v764, %v762
        %v825 = vpack.c.b16 %v765, %v763
        %v826 = vpack.c.b16 %v768, %v766
        %v827 = vpack.c.b16 %v769, %v767
        %v828 = vpack.c.b16 %v772, %v770
        %v829 = vpack.c.b16 %v773, %v771
        %v830 = vpack.c.b16 %v776, %v774
        %v831 = vpack.c.b16 %v777, %v775
        %v832 = vpack.c.b16 %v780, %v778
        %v833 = vpack.c.b16 %v781, %v779
        %v834 = vpack.c.b16 %v784, %v782
        %v835 = vpack.c.b16 %v785, %v783
        %v836 = vpack.c.b16 %v788, %v786
        %v837 = vpack.c.b16 %v789, %v787
        %v838 = vpack.c.b16 %v792, %v790
        %v839 = vpack.c.b16 %v793, %v791
        %v840 = vpack.c.b16 %v796, %v794
        %v841 = vpack.c.b16 %v797, %v795
        %v842 = vpack.c.b16 %v800, %v798
        %v843 = vpack.c.b16 %v801, %v799
        %v844 = vpack.c.b16 %v804, %v802
        %v845 = vpack.c.b16 %v805, %v803
        %v846 = vpack.c.b16 %v808, %v806
        %v847 = vpack.c.b16 %v809, %v807
        %v848 = vpack.c.b16 %v812, %v810
        %v849 = vpack.c.b16 %v813, %v811
        %v850 = vpack.c.b16 %v816, %v814
        %v851 = vpack.c.b16 %v817, %v815
        %v852 = vpack.c.b16 %v820, %v818
        %v853 = vpack.c.b16 %v821, %v819
        %886 = vmatprep.subr.bf16.mxu0 %v823
        %887 = vmatpush1.bf16.msra.mxu0 %v822
        %888 = vmatprep.subr.bf16.mxu0 %v825
        %889 = vmatpush1.bf16.msra.mxu0 %v824
        %890 = vmatprep.subr.bf16.mxu0 %v827
        %891 = vmatpush1.bf16.msra.mxu0 %v826
        %892 = vmatprep.subr.bf16.mxu0 %v829
        %893 = vmatpush1.bf16.msra.mxu0 %v828
        %894 = vmatprep.subr.bf16.mxu0 %v831
        %895 = vmatpush1.bf16.msra.mxu0 %v830
        %896 = vmatprep.subr.bf16.mxu0 %v833
        %897 = vmatpush1.bf16.msra.mxu0 %v832
        %898 = vmatprep.subr.bf16.mxu0 %v835
        %899 = vmatpush1.bf16.msra.mxu0 %v834
        %900 = vmatprep.subr.bf16.mxu0 %v837
        %901 = vmatpush1.bf16.msra.mxu0 %v836
        %902 = vmatprep.subr.bf16.mxu0 %v839
        %903 = vmatpush1.bf16.msra.mxu0 %v838
        %904 = vmatprep.subr.bf16.mxu0 %v841
        %905 = vmatpush1.bf16.msra.mxu0 %v840
        %906 = vmatprep.subr.bf16.mxu0 %v843
        %907 = vmatpush1.bf16.msra.mxu0 %v842
        %908 = vmatprep.subr.bf16.mxu0 %v845
        %909 = vmatpush1.bf16.msra.mxu0 %v844
        %910 = vmatprep.subr.bf16.mxu0 %v847
        %911 = vmatpush1.bf16.msra.mxu0 %v846
        %912 = vmatprep.subr.bf16.mxu0 %v849
        %913 = vmatpush1.bf16.msra.mxu0 %v848
        %914 = vmatprep.subr.bf16.mxu0 %v851
        %915 = vmatpush1.bf16.msra.mxu0 %v850
        %916 = vmatprep.subr.bf16.mxu0 %v853
        %917 = vmatpush1.bf16.msra.mxu0 %v852
        %918 = vmatprep.mubr.bf16.mxu0 %v667
        %919 = vmatmul.mubr.bf16.gmra.mrb[0].mxu0 %v666
        %v920 = vpop.f32.mrb[0].mxu0
        %v921 = vadd.f32 %v719, %v920
        %v922 = vpop.f32.mrb[0].mxu0
        %v923 = vadd.f32 %v723, %v922
        %v924 = vpop.f32.mrb[0].mxu0
        %v925 = vadd.f32 %v719, %v924
        %v926 = vpop.f32.mrb[0].mxu0
        %v927 = vadd.f32 %v723, %v926
        %928 = vmatprep.mubr.bf16.mxu0 %v669
        %929 = vmatmul.mubr.bf16.gmra.mrb[0].mxu0 %v668
        %v930 = vpop.f32.mrb[0].mxu0
        %v931 = vadd.f32 %v719, %v930
        %v932 = vpop.f32.mrb[0].mxu0
        %v933 = vadd.f32 %v723, %v932
        %v934 = vpop.f32.mrb[0].mxu0
        %v935 = vadd.f32 %v719, %v934
        %v936 = vpop.f32.mrb[0].mxu0
        %v937 = vadd.f32 %v723, %v936
        %938 = vmatprep.mubr.bf16.mxu0 %v671
        %939 = vmatmul.mubr.bf16.gmra.mrb[0].mxu0 %v670
        %v940 = vpop.f32.mrb[0].mxu0
        %v941 = vadd.f32 %v719, %v940
        %v942 = vpop.f32.mrb[0].mxu0
        %v943 = vadd.f32 %v723, %v942
        %v944 = vpop.f32.mrb[0].mxu0
        %v945 = vadd.f32 %v719, %v944
        %v946 = vpop.f32.mrb[0].mxu0
        %v947 = vadd.f32 %v723, %v946
        %948 = vmatprep.mubr.bf16.mxu0 %v673
        %949 = vmatmul.mubr.bf16.gmra.mrb[0].mxu0 %v672
        %v950 = vpop.f32.mrb[0].mxu0
        %v951 = vadd.f32 %v719, %v950
        %v952 = vpop.f32.mrb[0].mxu0
        %v953 = vadd.f32 %v723, %v952
        %v954 = vpop.f32.mrb[0].mxu0
        %v955 = vadd.f32 %v719, %v954
        %v956 = vpop.f32.mrb[0].mxu0
        %v957 = vadd.f32 %v723, %v956
        %958 = vmatprep.mubr.bf16.mxu0 %v675
        %959 = vmatmul.mubr.bf16.gmra.mrb[0].mxu0 %v674
        %v960 = vpop.f32.mrb[0].mxu0
        %v961 = vadd.f32 %v719, %v960
        %v962 = vpop.f32.mrb[0].mxu0
        %v963 = vadd.f32 %v723, %v962
        %v964 = vpop.f32.mrb[0].mxu0
        %v965 = vadd.f32 %v719, %v964
        %v966 = vpop.f32.mrb[0].mxu0
        %v967 = vadd.f32 %v723, %v966
        %968 = vmatprep.mubr.bf16.mxu0 %v677
        %969 = vmatmul.mubr.bf16.gmra.mrb[0].mxu0 %v676
        %v970 = vpop.f32.mrb[0].mxu0
        %v971 = vadd.f32 %v719, %v970
        %v972 = vpop.f32.mrb[0].mxu0
        %v973 = vadd.f32 %v723, %v972
        %v974 = vpop.f32.mrb[0].mxu0
        %v975 = vadd.f32 %v719, %v974
        %v976 = vpop.f32.mrb[0].mxu0
        %v977 = vadd.f32 %v723, %v976
        %978 = vmatprep.mubr.bf16.mxu0 %v679
        %979 = vmatmul.mubr.bf16.gmra.mrb[0].mxu0 %v678
        %v980 = vpop.f32.mrb[0].mxu0
        %v981 = vadd.f32 %v719, %v980
        %v982 = vpop.f32.mrb[0].mxu0
        %v983 = vadd.f32 %v723, %v982
        %v984 = vpop.f32.mrb[0].mxu0
        %v985 = vadd.f32 %v719, %v984
        %v986 = vpop.f32.mrb[0].mxu0
        %v987 = vadd.f32 %v723, %v986
        %988 = vmatprep.mubr.bf16.mxu0 %v681
        %989 = vmatmul.mubr.bf16.gmra.mrb[0].mxu0 %v680
        %v990 = vpop.f32.mrb[0].mxu0
        %v991 = vadd.f32 %v719, %v990
        %v992 = vpop.f32.mrb[0].mxu0
        %v993 = vadd.f32 %v723, %v992
        %v994 = vpop.f32.mrb[0].mxu0
        %v995 = vadd.f32 %v719, %v994
        %v996 = vpop.f32.mrb[0].mxu0
        %v997 = vadd.f32 %v723, %v996
        %998 = vdwg.mxu0
        %v999 = vmax.f32 %v921, 0.0
        %v1000 = vmax.f32 %v923, 0.0
        %v1001 = vmax.f32 %v925, 0.0
        %v1002 = vmax.f32 %v927, 0.0
        %v1003 = vmax.f32 %v931, 0.0
        %v1004 = vmax.f32 %v933, 0.0
        %v1005 = vmax.f32 %v935, 0.0
        %v1006 = vmax.f32 %v937, 0.0
        %v1007 = vmax.f32 %v941, 0.0
        %v1008 = vmax.f32 %v943, 0.0
        %v1009 = vmax.f32 %v945, 0.0
        %v1010 = vmax.f32 %v947, 0.0
        %v1011 = vmax.f32 %v951, 0.0
        %v1012 = vmax.f32 %v953, 0.0
        %v1013 = vmax.f32 %v955, 0.0
        %v1014 = vmax.f32 %v957, 0.0
        %v1015 = vmax.f32 %v961, 0.0
        %v1016 = vmax.f32 %v963, 0.0
        %v1017 = vmax.f32 %v965, 0.0
        %v1018 = vmax.f32 %v967, 0.0
        %v1019 = vmax.f32 %v971, 0.0
        %v1020 = vmax.f32 %v973, 0.0
        %v1021 = vmax.f32 %v975, 0.0
        %v1022 = vmax.f32 %v977, 0.0
        %v1023 = vmax.f32 %v981, 0.0
        %v1024 = vmax.f32 %v983, 0.0
        %v1025 = vmax.f32 %v985, 0.0
        %v1026 = vmax.f32 %v987, 0.0
        %v1027 = vmax.f32 %v991, 0.0
        %v1028 = vmax.f32 %v993, 0.0
        %v1029 = vmax.f32 %v995, 0.0
        %v1030 = vmax.f32 %v997, 0.0
        %v1031 = vpack.c.bf16 %v1001, %v999
        %v1032 = vpack.c.bf16 %v1002, %v1000
        %v1033 = vpack.c.bf16 %v1005, %v1003
        %v1034 = vpack.c.bf16 %v1006, %v1004
        %v1035 = vpack.c.bf16 %v1009, %v1007
        %v1036 = vpack.c.bf16 %v1010, %v1008
        %v1037 = vpack.c.bf16 %v1013, %v1011
        %v1038 = vpack.c.bf16 %v1014, %v1012
        %v1039 = vpack.c.bf16 %v1017, %v1015
        %v1040 = vpack.c.bf16 %v1018, %v1016
        %v1041 = vpack.c.bf16 %v1021, %v1019
        %v1042 = vpack.c.bf16 %v1022, %v1020
        %v1043 = vpack.c.bf16 %v1025, %v1023
        %v1044 = vpack.c.bf16 %v1026, %v1024
        %v1045 = vpack.c.bf16 %v1029, %v1027
        %v1046 = vpack.c.bf16 %v1030, %v1028
        %v1047 = vld [vmem:[#allocation2] sm:$0xf]
        %v1048 = vld [vmem:[#allocation2 + $0x4] sm:$0xf]
        %v1049 = vld [vmem:[#allocation2 + $0x8] sm:$0xf]
        %v1050 = vld [vmem:[#allocation2 + $0xc] sm:$0xf]
        %v1051 = vld [vmem:[#allocation2 + $0x10] sm:$0xf]
        %v1052 = vld [vmem:[#allocation2 + $0x14] sm:$0xf]
        %v1053 = vld [vmem:[#allocation2 + $0x18] sm:$0xf]
        %v1054 = vld [vmem:[#allocation2 + $0x1c] sm:$0xf]
        %v1055 = vld [vmem:[#allocation2 + $0x20] sm:$0xf]
        %v1056 = vld [vmem:[#allocation2 + $0x24] sm:$0xf]
        %v1057 = vld [vmem:[#allocation2 + $0x28] sm:$0xf]
        %v1058 = vld [vmem:[#allocation2 + $0x2c] sm:$0xf]
        %v1059 = vld [vmem:[#allocation2 + $0x30] sm:$0xf]
        %v1060 = vld [vmem:[#allocation2 + $0x34] sm:$0xf]
        %v1061 = vld [vmem:[#allocation2 + $0x38] sm:$0xf]
        %v1062 = vld [vmem:[#allocation2 + $0x3c] sm:$0xf]
        %v1063 = vld [vmem:[#allocation2 + $0x40] sm:$0xf]
        %v1064 = vld [vmem:[#allocation2 + $0x44] sm:$0xf]
        %v1065 = vld [vmem:[#allocation2 + $0x48] sm:$0xf]
        %v1066 = vld [vmem:[#allocation2 + $0x4c] sm:$0xf]
        %v1067 = vld [vmem:[#allocation2 + $0x50] sm:$0xf]
        %v1068 = vld [vmem:[#allocation2 + $0x54] sm:$0xf]
        %v1069 = vld [vmem:[#allocation2 + $0x58] sm:$0xf]
        %v1070 = vld [vmem:[#allocation2 + $0x5c] sm:$0xf]
        %v1071 = vld [vmem:[#allocation2 + $0x60] sm:$0xf]
        %v1072 = vld [vmem:[#allocation2 + $0x64] sm:$0xf]
        %v1073 = vld [vmem:[#allocation2 + $0x68] sm:$0xf]
        %v1074 = vld [vmem:[#allocation2 + $0x6c] sm:$0xf]
        %v1075 = vld [vmem:[#allocation2 + $0x70] sm:$0xf]
        %v1076 = vld [vmem:[#allocation2 + $0x74] sm:$0xf]
        %v1077 = vld [vmem:[#allocation2 + $0x78] sm:$0xf]
        %v1078 = vld [vmem:[#allocation2 + $0x7c] sm:$0xf]
        %v1079 = vld [vmem:[%s6] sm:$0x1]
        %v1081 = vlaneseq
        %v1082 = vshrl.u32 %v1081, 7
        %v1083 = vsub.s32 0, %v1082
        %v1084 = vrot.slane %v1079, %v1083
        %v1118 = vunpack.c.l.b16 %v1047
        %v1119 = vunpack.c.l.b16 %v1048
        %v1120 = vunpack.c.l.b16 %v1049
        %v1121 = vunpack.c.l.b16 %v1050
        %v1122 = vunpack.c.l.b16 %v1051
        %v1123 = vunpack.c.l.b16 %v1052
        %v1124 = vunpack.c.l.b16 %v1053
        %v1125 = vunpack.c.l.b16 %v1054
        %v1126 = vunpack.c.l.b16 %v1055
        %v1127 = vunpack.c.l.b16 %v1056
        %v1128 = vunpack.c.l.b16 %v1057
        %v1129 = vunpack.c.l.b16 %v1058
        %v1130 = vunpack.c.l.b16 %v1059
        %v1131 = vunpack.c.l.b16 %v1060
        %v1132 = vunpack.c.l.b16 %v1061
        %v1133 = vunpack.c.l.b16 %v1062
        %v1134 = vunpack.c.l.b16 %v1063
        %v1135 = vunpack.c.l.b16 %v1064
        %v1136 = vunpack.c.l.b16 %v1065
        %v1137 = vunpack.c.l.b16 %v1066
        %v1138 = vunpack.c.l.b16 %v1067
        %v1139 = vunpack.c.l.b16 %v1068
        %v1140 = vunpack.c.l.b16 %v1069
        %v1141 = vunpack.c.l.b16 %v1070
        %v1142 = vunpack.c.l.b16 %v1071
        %v1143 = vunpack.c.l.b16 %v1072
        %v1144 = vunpack.c.l.b16 %v1073
        %v1145 = vunpack.c.l.b16 %v1074
        %v1146 = vunpack.c.l.b16 %v1075
        %v1147 = vunpack.c.l.b16 %v1076
        %v1148 = vunpack.c.l.b16 %v1077
        %v1149 = vunpack.c.l.b16 %v1078
        %v1150 = vpack.c.b16 %v1119, %v1118
        %v1151 = vpack.c.b16 %v1121, %v1120
        %v1152 = vpack.c.b16 %v1123, %v1122
        %v1153 = vpack.c.b16 %v1125, %v1124
        %v1154 = vpack.c.b16 %v1127, %v1126
        %v1155 = vpack.c.b16 %v1129, %v1128
        %v1156 = vpack.c.b16 %v1131, %v1130
        %v1157 = vpack.c.b16 %v1133, %v1132
        %v1158 = vpack.c.b16 %v1135, %v1134
        %v1159 = vpack.c.b16 %v1137, %v1136
        %v1160 = vpack.c.b16 %v1139, %v1138
        %v1161 = vpack.c.b16 %v1141, %v1140
        %v1162 = vpack.c.b16 %v1143, %v1142
        %v1163 = vpack.c.b16 %v1145, %v1144
        %v1164 = vpack.c.b16 %v1147, %v1146
        %v1165 = vpack.c.b16 %v1149, %v1148
        %1182 = vmatprep.subr.bf16.mxu0 0
        %1183 = vmatpush1.bf16.msra.mxu0 %v1150
        %1184 = vmatprep.subr.bf16.mxu0 0
        %1185 = vmatpush1.bf16.msra.mxu0 %v1151
        %1186 = vmatprep.subr.bf16.mxu0 0
        %1187 = vmatpush1.bf16.msra.mxu0 %v1152
        %1188 = vmatprep.subr.bf16.mxu0 0
        %1189 = vmatpush1.bf16.msra.mxu0 %v1153
        %1190 = vmatprep.subr.bf16.mxu0 0
        %1191 = vmatpush1.bf16.msra.mxu0 %v1154
        %1192 = vmatprep.subr.bf16.mxu0 0
        %1193 = vmatpush1.bf16.msra.mxu0 %v1155
        %1194 = vmatprep.subr.bf16.mxu0 0
        %1195 = vmatpush1.bf16.msra.mxu0 %v1156
        %1196 = vmatprep.subr.bf16.mxu0 0
        %1197 = vmatpush1.bf16.msra.mxu0 %v1157
        %1198 = vmatprep.subr.bf16.mxu0 0
        %1199 = vmatpush1.bf16.msra.mxu0 %v1158
        %1200 = vmatprep.subr.bf16.mxu0 0
        %1201 = vmatpush1.bf16.msra.mxu0 %v1159
        %1202 = vmatprep.subr.bf16.mxu0 0
        %1203 = vmatpush1.bf16.msra.mxu0 %v1160
        %1204 = vmatprep.subr.bf16.mxu0 0
        %1205 = vmatpush1.bf16.msra.mxu0 %v1161
        %1206 = vmatprep.subr.bf16.mxu0 0
        %1207 = vmatpush1.bf16.msra.mxu0 %v1162
        %1208 = vmatprep.subr.bf16.mxu0 0
        %1209 = vmatpush1.bf16.msra.mxu0 %v1163
        %1210 = vmatprep.subr.bf16.mxu0 0
        %1211 = vmatpush1.bf16.msra.mxu0 %v1164
        %1212 = vmatprep.subr.bf16.mxu0 0
        %1213 = vmatpush1.bf16.msra.mxu0 %v1165
        %1214 = vmatprep.mubr.bf16.mxu0 %v1032
        %1215 = vmatmul.mubr.bf16.gmra.mrb[0].mxu0 %v1031
        %v1216 = vpop.f32.mrb[0].mxu0
        %v1217 = vadd.f32 %v1084, %v1216
        %v1218 = vpop.f32.mrb[0].mxu0
        %v1219 = vpop.f32.mrb[0].mxu0
        %v1220 = vadd.f32 %v1084, %v1219
        %v1221 = vpop.f32.mrb[0].mxu0
        %1222 = vmatprep.mubr.bf16.mxu0 %v1034
        %1223 = vmatmul.mubr.bf16.gmra.mrb[0].mxu0 %v1033
        %v1224 = vpop.f32.mrb[0].mxu0
        %v1225 = vadd.f32 %v1084, %v1224
        %v1226 = vpop.f32.mrb[0].mxu0
        %v1227 = vpop.f32.mrb[0].mxu0
        %v1228 = vadd.f32 %v1084, %v1227
        %v1229 = vpop.f32.mrb[0].mxu0
        %1230 = vmatprep.mubr.bf16.mxu0 %v1036
        %1231 = vmatmul.mubr.bf16.gmra.mrb[0].mxu0 %v1035
        %v1232 = vpop.f32.mrb[0].mxu0
        %v1233 = vadd.f32 %v1084, %v1232
        %v1234 = vpop.f32.mrb[0].mxu0
        %v1235 = vpop.f32.mrb[0].mxu0
        %v1236 = vadd.f32 %v1084, %v1235
        %v1237 = vpop.f32.mrb[0].mxu0
        %1238 = vmatprep.mubr.bf16.mxu0 %v1038
        %1239 = vmatmul.mubr.bf16.gmra.mrb[0].mxu0 %v1037
        %v1240 = vpop.f32.mrb[0].mxu0
        %v1241 = vadd.f32 %v1084, %v1240
        %v1242 = vpop.f32.mrb[0].mxu0
        %v1243 = vpop.f32.mrb[0].mxu0
        %v1244 = vadd.f32 %v1084, %v1243
        %v1245 = vpop.f32.mrb[0].mxu0
        %1246 = vmatprep.mubr.bf16.mxu0 %v1040
        %1247 = vmatmul.mubr.bf16.gmra.mrb[0].mxu0 %v1039
        %v1248 = vpop.f32.mrb[0].mxu0
        %v1249 = vadd.f32 %v1084, %v1248
        %v1250 = vpop.f32.mrb[0].mxu0
        %v1251 = vpop.f32.mrb[0].mxu0
        %v1252 = vadd.f32 %v1084, %v1251
        %v1253 = vpop.f32.mrb[0].mxu0
        %1254 = vmatprep.mubr.bf16.mxu0 %v1042
        %1255 = vmatmul.mubr.bf16.gmra.mrb[0].mxu0 %v1041
        %v1256 = vpop.f32.mrb[0].mxu0
        %v1257 = vadd.f32 %v1084, %v1256
        %v1258 = vpop.f32.mrb[0].mxu0
        %v1259 = vpop.f32.mrb[0].mxu0
        %v1260 = vadd.f32 %v1084, %v1259
        %v1261 = vpop.f32.mrb[0].mxu0
        %1262 = vmatprep.mubr.bf16.mxu0 %v1044
        %1263 = vmatmul.mubr.bf16.gmra.mrb[0].mxu0 %v1043
        %v1264 = vpop.f32.mrb[0].mxu0
        %v1265 = vadd.f32 %v1084, %v1264
        %v1266 = vpop.f32.mrb[0].mxu0
        %v1267 = vpop.f32.mrb[0].mxu0
        %v1268 = vadd.f32 %v1084, %v1267
        %v1269 = vpop.f32.mrb[0].mxu0
        %1270 = vmatprep.mubr.bf16.mxu0 %v1046
        %1271 = vmatmul.mubr.bf16.gmra.mrb[0].mxu0 %v1045
        %v1272 = vpop.f32.mrb[0].mxu0
        %v1273 = vadd.f32 %v1084, %v1272
        %v1274 = vpop.f32.mrb[0].mxu0
        %v1275 = vpop.f32.mrb[0].mxu0
        %v1276 = vadd.f32 %v1084, %v1275
        %v1277 = vpop.f32.mrb[0].mxu0
        %1278 = vdwg.mxu0
        %1279 = vst [vmem:[%s287] sm:$0xff] %v1217
        %1280 = vst [vmem:[%s287 + $0x8] sm:$0xff] %v1220
        %1281 = vst [vmem:[%s287 + $0x10] sm:$0xff] %v1225
        %1282 = vst [vmem:[%s287 + $0x18] sm:$0xff] %v1228
        %1283 = vst [vmem:[%s287 + $0x20] sm:$0xff] %v1233
        %1284 = vst [vmem:[%s287 + $0x28] sm:$0xff] %v1236
        %1285 = vst [vmem:[%s287 + $0x30] sm:$0xff] %v1241
        %1286 = vst [vmem:[%s287 + $0x38] sm:$0xff] %v1244
        %1287 = vst [vmem:[%s287 + $0x40] sm:$0xff] %v1249
        %1288 = vst [vmem:[%s287 + $0x48] sm:$0xff] %v1252
        %1289 = vst [vmem:[%s287 + $0x50] sm:$0xff] %v1257
        %1290 = vst [vmem:[%s287 + $0x58] sm:$0xff] %v1260
        %1291 = vst [vmem:[%s287 + $0x60] sm:$0xff] %v1265
        %1292 = vst [vmem:[%s287 + $0x68] sm:$0xff] %v1268
        %1293 = vst [vmem:[%s287 + $0x70] sm:$0xff] %v1273
        %1294 = vst [vmem:[%s287 + $0x78] sm:$0xff] %v1276
        %s1295 = sand.u32 %s182, 1
        %s1296 = scalar_lea.sflag [#allocation4], %s1295
        %s1297 = sand.u32 %s182, 1
        %s1298 = smul.addr %s1297, 128
        %s1299 = scalar_lea.vmem [#allocation5], %s1298
        // Predicated region
        $region53: #{tpu_custom_call.1} parent=47 // pred_check
          %p1300 = pneg %p192
        $region54: #{tpu_custom_call.1} parent=47 // pred_check_branch
          %1302 = sbr.rel (%p1300) target = $region56
        $region55: #{tpu_custom_call.1} parent=47 // pred_region
          %s1303 = smul.u32 16, %s22
          %s1305 = ssub.s32 2048, 2048
          %1306 = vsyncadd %s1296, %s1305
          %s1307 = smul.addr %s1303, 128
          %s1308 = scalar_lea.hbm %s7, %s1307
          %s1309 = sshll.u32 %s1299, 4
          %s1310 = int_to_ptr.vmem [resolvable:$true] %s1309
          %1315 = dma.vmem_to_hbm [thread:$0]  %s1310, 2048, %s1308, %s1296, 128, 128, 8
        $region56: #{tpu_custom_call.1} parent=47 // pred_fallthru
          _
      $region48: #{tpu_custom_call.1} parent=5 // pred_fallthru
        _
      %p1316 = scmp.le.s32.totalorder 2, %s17
      // Predicated region
      $region57: #{tpu_custom_call.1} parent=5 // pred_check
        %p1317 = pneg %p1316
      $region58: #{tpu_custom_call.1} parent=5 // pred_check_branch
        %1319 = sbr.rel (%p1317) target = $region60
      $region59: #{tpu_custom_call.1} parent=5 // pred_region
        %s1320 = ssub.s32 %s17, 2
        // Predicated region
        $region61: #{tpu_custom_call.1} parent=59 // pred_check
          %p1321 = pneg %p198
        $region62: #{tpu_custom_call.1} parent=59 // pred_check_branch
          %1323 = sbr.rel (%p1321) target = $region64
        $region63: #{tpu_custom_call.1} parent=59 // pred_region
          %s1324 = sand.u32 %s183, 1
          %s1325 = scalar_lea.sflag [#allocation4], %s1324
          %s1326 = sand.u32 %s183, 1
          %s1327 = smul.addr %s1326, 128
          %s1328 = scalar_lea.vmem [#allocation5], %s1327
          %1329 = dma.done %s1325, 2048
        $region64: #{tpu_custom_call.1} parent=59 // pred_fallthru
          _
      $region60: #{tpu_custom_call.1} parent=5 // pred_fallthru
        _
    $region6: #{tpu_custom_call.1} parent=1 // loop_footer
      %s21 = sadd.s32 1, %s17
    $region7: #{tpu_custom_call.1} parent=1 // loop_footer_branch
      %16 = sbr.rel target = $region3
    $region8: #{tpu_custom_call.1} parent=1 // loop_exit
      _
    %1330 = vsyncpa [#allocation3], 1
    %s1331 = scalar_lea.sflag [#allocation3], 1
    %1332 = vsyncpa %s1331, 1
    %1333 = vsyncpa [#allocation4], 1
    %s1334 = scalar_lea.sflag [#allocation4], 1
    %1335 = vsyncpa %s1334, 1

</llo_original>
